<compile_context>
chip_gen: v7x
topology: tpu7x:2x2x1
jax: 0.10.0
libtpu: 0.0.40
codegen_flags: <defaults>
</compile_context>

<pallas_src>
import functools
import math

import numpy as np
import jax
import jax.numpy as jnp
from jax.experimental import pallas as pl
from jax.experimental.pallas import tpu as pltpu


# ---------------------------------------------------------------------------
# helpers
# ---------------------------------------------------------------------------

def _pick_lane_tile(total, rows, target_bytes=1 << 20):
    """Largest lane tile (multiple of 128) dividing `total` such that an f32
    (rows, tile) block stays around `target_bytes`.  Falls back to the full
    extent when `total` is not 128-aligned (full-dim blocks are always legal)."""
    if total % 128 != 0:
        return total
    max_lanes = max(128, target_bytes // (4 * max(int(rows), 1)))
    best = 128
    cand = 128
    while cand <= total:
        if total % cand == 0 and cand <= max_lanes:
            best = cand
        cand += 128
    return best


# ---------------------------------------------------------------------------
# 1) PosEnSine  (batch independent -> computed once per spatial shape)
# ---------------------------------------------------------------------------

def _pos_en_sine_kernel(emb_y_ref, emb_x_ref, inv_ref, phase_ref, out_ref, *,
                        num_pos_feats):
    # emb_y/emb_x: (1, Lb) normalized row / column embeddings per flat position
    # inv/phase  : (C, 1) per-channel 1/dim_t and sin-phase (0 or pi/2)
    c = out_ref.shape[0]
    c_idx = jax.lax.broadcasted_iota(jnp.int32, (c, 1), 0)
    emb = jnp.where(c_idx < num_pos_feats, emb_y_ref[...], emb_x_ref[...])
    # one FMA + one sin per element (cos folded into the phase)
    out_ref[...] = jnp.sin(emb * inv_ref[...] + phase_ref[...])


def pos_en_sine(h, w, num_pos_feats, temperature=10000.0, scale=2.0 * math.pi):
    """Returns the (C, H*W) lane-dense positional encoding, C = 2*num_pos_feats."""
    P = int(num_pos_feats)
    C = 2 * P
    L = h * w
    eps = 1e-6

    # per-channel constants (host side, tiny)
    f = np.arange(P, dtype=np.float32)
    dim_t = np.float32(temperature) ** (np.float32(2.0) * np.floor(f / 2.0)
                                        / np.float32(P))
    inv_half = (np.float32(1.0) / dim_t).astype(np.float32)
    phase_half = np.where((np.arange(P) % 2) == 0,
                          np.float32(0.0), np.float32(math.pi / 2.0)
                          ).astype(np.float32)
    inv_dim_t = np.concatenate([inv_half, inv_half]).reshape(C, 1)
    phase = np.concatenate([phase_half, phase_half]).reshape(C, 1)

    # per-position embeddings (cumsum of ones == index + 1), normalized
    y_vals = ((np.arange(h, dtype=np.float32) + np.float32(1.0))
              / np.float32(h + eps)) * np.float32(scale)
    x_vals = ((np.arange(w, dtype=np.float32) + np.float32(1.0))
              / np.float32(w + eps)) * np.float32(scale)
    emb_y = np.repeat(y_vals, w).reshape(1, L).astype(np.float32)
    emb_x = np.tile(x_vals, h).reshape(1, L).astype(np.float32)

    Lb = _pick_lane_tile(L, C)
    kernel = functools.partial(_pos_en_sine_kernel, num_pos_feats=P)
    pos = pl.pallas_call(
        kernel,
        out_shape=jax.ShapeDtypeStruct((C, L), jnp.float32),
        grid=(L // Lb,),
        in_specs=[pl.BlockSpec((1, Lb), lambda l: (0, l)),
                  pl.BlockSpec((1, Lb), lambda l: (0, l)),
                  pl.BlockSpec((C, 1), lambda l: (0, 0)),
                  pl.BlockSpec((C, 1), lambda l: (0, 0))],
        out_specs=pl.BlockSpec((C, Lb), lambda l: (0, l)),
        compiler_params=pltpu.CompilerParams(
            dimension_semantics=("parallel",)),
    )(jnp.asarray(emb_y), jnp.asarray(emb_x),
      jnp.asarray(inv_dim_t), jnp.asarray(phase))
    return pos


# ---------------------------------------------------------------------------
# 2) fused k/v projections (k gets "+ positional encoding")
# ---------------------------------------------------------------------------

def _kv_proj_kernel(k_ref, v_ref, pos_ref, wk_ref, wv_ref, kp_ref, vp_ref, *,
                    mxu_dtype):
    kin = (k_ref[...] + pos_ref[...]).astype(mxu_dtype)
    vin = v_ref[...].astype(mxu_dtype)
    kp_ref[...] = jnp.dot(wk_ref[...], kin,
                          preferred_element_type=jnp.float32).astype(kp_ref.dtype)
    vp_ref[...] = jnp.dot(wv_ref[...], vin,
                          preferred_element_type=jnp.float32).astype(vp_ref.dtype)


def kv_project(kf, vf, k_pos, wk, wv, *, mxu_dtype):
    """kf/vf: (B, Cin, L) f32, k_pos: (Cin, L) f32, wk/wv: (Cout, Cin) mxu dtype.
    Returns (k_proj, v_proj) each (B, Cout, L) stored in mxu dtype."""
    B, Cin, L = kf.shape
    Cout = wk.shape[0]
    Lb = _pick_lane_tile(L, max(Cin, Cout))
    grid = (B, L // Lb)
    out_shape = (jax.ShapeDtypeStruct((B, Cout, L), mxu_dtype),
                 jax.ShapeDtypeStruct((B, Cout, L), mxu_dtype))
    return pl.pallas_call(
        functools.partial(_kv_proj_kernel, mxu_dtype=mxu_dtype),
        out_shape=out_shape,
        grid=grid,
        in_specs=[pl.BlockSpec((None, Cin, Lb), lambda b, l: (b, 0, l)),
                  pl.BlockSpec((None, Cin, Lb), lambda b, l: (b, 0, l)),
                  pl.BlockSpec((Cin, Lb), lambda b, l: (0, l)),
                  pl.BlockSpec((Cout, Cin), lambda b, l: (0, 0)),
                  pl.BlockSpec((Cout, Cin), lambda b, l: (0, 0))],
        out_specs=(pl.BlockSpec((None, Cout, Lb), lambda b, l: (b, 0, l)),
                   pl.BlockSpec((None, Cout, Lb), lambda b, l: (b, 0, l))),
        compiler_params=pltpu.CompilerParams(
            dimension_semantics=("parallel", "parallel")),
    )(kf, vf, k_pos, wk, wv)


# ---------------------------------------------------------------------------
# 3) fused q-proj(+pos) -> multi-head attention -> fc -> MLP -> residual
#    (+ BatchNorm partial statistics)
# ---------------------------------------------------------------------------

def _attn_fc_mlp_kernel(q_ref, qpos_ref, k_ref, v_ref, wq_ref, fc_ref,
                        w1_ref, b1_ref, w2_ref, b2_ref,
                        y_ref, sum_ref, ssq_ref,
                        *, n_head, d_k, d_v, mxu_dtype, approx_recip):
    f32 = jnp.float32

    # --- q projection (+ positional encoding); 1/sqrt(Nk) folded into wq ---
    q_in = (q_ref[...] + qpos_ref[...]).astype(mxu_dtype)
    q_proj = jnp.dot(wq_ref[...], q_in, preferred_element_type=f32)   # (C, Lq)

    lk = k_ref.shape[-1]
    ones_k = jnp.ones((1, lk), mxu_dtype)

    # --- per-head attention; outputs stay (d_v, Lq) lane-dense ---
    heads = []
    for h in range(n_head):                                   # small static loop
        qh = q_proj[h * d_k:(h + 1) * d_k, :].astype(mxu_dtype)   # (d_k, Lq)
        kh = k_ref[h]                                             # (d_k, Lk)
        vh = v_ref[h]                                             # (d_v, Lk)
        # scores: contract over d_k (no q transpose anywhere) -> (Lq, Lk)
        s = jax.lax.dot_general(qh, kh, (((0,), (0,)), ((), ())),
                                preferred_element_type=f32)
        s = s - jnp.max(s, axis=-1, keepdims=True)
        p = jnp.exp(s).astype(mxu_dtype)                          # (Lq, Lk)
        # un-normalized PV and the softmax denominator, both lane-oriented
        o_un = jax.lax.dot_general(vh, p, (((1,), (1,)), ((), ())),
                                   preferred_element_type=f32)    # (d_v, Lq)
        l = jax.lax.dot_general(ones_k, p, (((1,), (1,)), ((), ())),
                                preferred_element_type=f32)       # (1, Lq)
        heads.append(o_un * pl.reciprocal(l, approx=approx_recip))
    attn = jnp.concatenate(heads, axis=0)                         # (C, Lq) f32

    # --- fc projection, linear1 -> ReLU -> linear2, residual ---
    x = jnp.dot(fc_ref[...], attn.astype(mxu_dtype), preferred_element_type=f32)
    h1 = jnp.dot(w1_ref[...], x.astype(mxu_dtype), preferred_element_type=f32)
    h1 = jnp.maximum(h1 + b1_ref[...], 0.0)
    y = x + jnp.dot(w2_ref[...], h1.astype(mxu_dtype),
                    preferred_element_type=f32) + b2_ref[...]
    y_ref[...] = y

    # --- BatchNorm partial statistics for this (batch, q-tile) block ---
    sum_ref[...] = jnp.sum(y, axis=-1, keepdims=True)
    ssq_ref[...] = jnp.sum(y * y, axis=-1, keepdims=True)


def attention_fc_mlp(qf, q_pos, k_proj, v_proj, wq, fc_w, w1, b1, w2, b2,
                     *, n_head, mxu_dtype, approx_recip):
    """qf: (B, C, Lq) f32; q_pos: (C, Lq) f32;
    k_proj/v_proj: (B, n_head, d, Lk) in mxu dtype; weights in mxu dtype,
    biases (C, 1) f32.  Returns (y, sum, sumsq)."""
    B, C, Lq = qf.shape
    _, _, d_k, Lk = k_proj.shape
    d_v = v_proj.shape[2]
    # keep the (Lqb, Lk) f32 scores block around ~1 MiB
    Lqb = _pick_lane_tile(Lq, Lk)
    T = Lq // Lqb
    grid = (B, T)

    kernel = functools.partial(_attn_fc_mlp_kernel, n_head=n_head, d_k=d_k,
                               d_v=d_v, mxu_dtype=mxu_dtype,
                               approx_recip=approx_recip)
    out_shape = (jax.ShapeDtypeStruct((B, C, Lq), jnp.float32),
                 jax.ShapeDtypeStruct((B, T, C, 1), jnp.float32),
                 jax.ShapeDtypeStruct((B, T, C, 1), jnp.float32))
    return pl.pallas_call(
        kernel,
        out_shape=out_shape,
        grid=grid,
        in_specs=[
            pl.BlockSpec((None, C, Lqb), lambda b, t: (b, 0, t)),
            pl.BlockSpec((C, Lqb), lambda b, t: (0, t)),
            pl.BlockSpec((None, n_head, d_k, Lk), lambda b, t: (b, 0, 0, 0)),
            pl.BlockSpec((None, n_head, d_v, Lk), lambda b, t: (b, 0, 0, 0)),
            pl.BlockSpec(wq.shape, lambda b, t: (0, 0)),
            pl.BlockSpec(fc_w.shape, lambda b, t: (0, 0)),
            pl.BlockSpec(w1.shape, lambda b, t: (0, 0)),
            pl.BlockSpec(b1.shape, lambda b, t: (0, 0)),
            pl.BlockSpec(w2.shape, lambda b, t: (0, 0)),
            pl.BlockSpec(b2.shape, lambda b, t: (0, 0)),
        ],
        out_specs=(pl.BlockSpec((None, C, Lqb), lambda b, t: (b, 0, t)),
                   pl.BlockSpec((None, None, C, 1), lambda b, t: (b, t, 0, 0)),
                   pl.BlockSpec((None, None, C, 1), lambda b, t: (b, t, 0, 0))),
        compiler_params=pltpu.CompilerParams(
            dimension_semantics=("parallel", "parallel"),
            vmem_limit_bytes=32 * 1024 * 1024),
    )(qf, q_pos, k_proj, v_proj, wq, fc_w, w1, b1, w2, b2)


# ---------------------------------------------------------------------------
# 4) BatchNorm affine application (stats already reduced outside)
# ---------------------------------------------------------------------------

def _bn_affine_kernel(y_ref, scale_ref, shift_ref, o_ref):
    o_ref[...] = y_ref[...] * scale_ref[...] + shift_ref[...]


def bn_affine(y, scale, shift):
    B, C, L = y.shape
    Lb = _pick_lane_tile(L, C)
    grid = (B, L // Lb)
    return pl.pallas_call(
        _bn_affine_kernel,
        out_shape=jax.ShapeDtypeStruct((B, C, L), jnp.float32),
        grid=grid,
        in_specs=[pl.BlockSpec((None, C, Lb), lambda b, l: (b, 0, l)),
                  pl.BlockSpec((C, 1), lambda b, l: (0, 0)),
                  pl.BlockSpec((C, 1), lambda b, l: (0, 0))],
        out_specs=pl.BlockSpec((None, C, Lb), lambda b, l: (b, 0, l)),
        compiler_params=pltpu.CompilerParams(
            dimension_semantics=("parallel", "parallel")),
    )(y, scale, shift)


# ---------------------------------------------------------------------------
# full TransformerDecoderUnit forward (Pallas path)
# ---------------------------------------------------------------------------

def transformer_decoder_unit_forward(params, q, k, v, q_pos, k_pos, *, n_head,
                                     mxu_dtype=jnp.bfloat16):
    B, C, H, W = q.shape
    _, _, Hk, Wk = k.shape
    Lq, Lk = H * W, Hk * Wk
    d_k = d_v = C // n_head
    f32 = jnp.float32
    approx_recip = bool(np.dtype(mxu_dtype) != np.dtype(np.float32))

    qf = q.reshape(B, C, Lq)
    kf = k.reshape(B, C, Lk)
    vf = v.reshape(B, C, Lk)

    # Weight prep (tiny, one-off per call): fold the attention temperature
    # 1/sqrt(Nk) into w_qs; cast MXU operands to the matmul dtype.
    wq = (params["w_qs"] * np.float32(1.0 / math.sqrt(float(Lk)))).astype(mxu_dtype)
    wk = params["w_ks"].astype(mxu_dtype)
    wv = params["w_vs"].astype(mxu_dtype)
    fc_w = params["fc"].astype(mxu_dtype)
    w1 = params["w1"].astype(mxu_dtype)
    w2 = params["w2"].astype(mxu_dtype)
    b1 = params["b1"].reshape(C, 1).astype(f32)
    b2 = params["b2"].reshape(C, 1).astype(f32)

    # k/v projections (k gets "+ pos" fused); stored in the MXU operand dtype.
    k_proj, v_proj = kv_project(kf, vf, k_pos, wk, wv, mxu_dtype=mxu_dtype)
    # free metadata reshape: heads onto a leading dim so the attention kernel
    # never has to slice packed sublanes.
    k_proj = k_proj.reshape(B, n_head, d_k, Lk)
    v_proj = v_proj.reshape(B, n_head, d_v, Lk)

    # fused q-proj(+pos) -> multi-head attention -> fc -> MLP -> residual,
    # plus per-block BatchNorm partial sums.
    y, ysum, yssq = attention_fc_mlp(qf, q_pos, k_proj, v_proj, wq, fc_w,
                                     w1, b1, w2, b2, n_head=n_head,
                                     mxu_dtype=mxu_dtype,
                                     approx_recip=approx_recip)

    # BatchNorm2d (training-mode batch statistics, biased variance): only the
    # tiny (C,) reduction + scale/shift computation is left to XLA.
    n = jnp.float32(B * Lq)
    mean = jnp.sum(ysum, axis=(0, 1)) / n                 # (C, 1)
    var = jnp.sum(yssq, axis=(0, 1)) / n - mean * mean
    inv_std = jax.lax.rsqrt(var + 1e-5)
    scale = params["gamma"].reshape(C, 1) * inv_std
    shift = params["beta"].reshape(C, 1) - mean * scale
    out = bn_affine(y, scale, shift)
    return out.reshape(B, C, H, W)


# ---------------------------------------------------------------------------
# pure-JAX / numpy references for validation
# ---------------------------------------------------------------------------

def _reference_pos_en_sine(P, h, w, temperature=10000.0):
    eps = 1e-6
    scale = 2.0 * math.pi
    not_mask = np.ones((1, h, w), dtype=np.float32)
    y_embed = np.cumsum(not_mask, axis=1, dtype=np.float32)
    x_embed = np.cumsum(not_mask, axis=2, dtype=np.float32)
    y_embed = y_embed / (y_embed[:, -1:, :] + eps) * scale
    x_embed = x_embed / (x_embed[:, :, -1:] + eps) * scale
    dim_t = np.arange(P, dtype=np.float32)
    dim_t = temperature ** (2.0 * (dim_t // 2) / P)
    pos_x = x_embed[:, :, :, None] / dim_t
    pos_y = y_embed[:, :, :, None] / dim_t
    pos_x = np.stack((np.sin(pos_x[..., 0::2]), np.cos(pos_x[..., 1::2])),
                     axis=4).reshape(1, h, w, P)
    pos_y = np.stack((np.sin(pos_y[..., 0::2]), np.cos(pos_y[..., 1::2])),
                     axis=4).reshape(1, h, w, P)
    pos = np.concatenate((pos_y, pos_x), axis=3).transpose(0, 3, 1, 2)
    return pos[0]


def _reference_forward(params, q, k, v, *, n_head):
    HI = jax.lax.Precision.HIGHEST

    def pos_en(x, P):
        b, _, h, w = x.shape
        eps = 1e-6
        scale = 2.0 * math.pi
        ones = jnp.ones((1, h, w), jnp.float32)
        y_embed = jnp.cumsum(ones, axis=1)
        x_embed = jnp.cumsum(ones, axis=2)
        y_embed = y_embed / (y_embed[:, -1:, :] + eps) * scale
        x_embed = x_embed / (x_embed[:, :, -1:] + eps) * scale
        dim_t = jnp.arange(P, dtype=jnp.float32)
        dim_t = 10000.0 ** (2.0 * jnp.floor(dim_t / 2.0) / P)
        pos_x = x_embed[..., None] / dim_t
        pos_y = y_embed[..., None] / dim_t
        pos_x = jnp.stack((jnp.sin(pos_x[..., 0::2]), jnp.cos(pos_x[..., 1::2])),
                          axis=4).reshape(1, h, w, P)
        pos_y = jnp.stack((jnp.sin(pos_y[..., 0::2]), jnp.cos(pos_y[..., 1::2])),
                          axis=4).reshape(1, h, w, P)
        pos = jnp.concatenate((pos_y, pos_x), axis=3).transpose(0, 3, 1, 2)
        return jnp.tile(pos, (b, 1, 1, 1))

    def conv1x1(x, w, b=None):
        y = jnp.einsum("oc,bchw->bohw", w, x, precision=HI)
        if b is not None:
            y = y + b[None, :, None, None]
        return y

    B, C, H, W = q.shape
    d_k = d_v = C // n_head
    qp = q + pos_en(q, C // 2)
    kp = k + pos_en(k, C // 2)
    qh = conv1x1(qp, params["w_qs"]).reshape(B, n_head, d_k, H, W)
    kh = conv1x1(kp, params["w_ks"]).reshape(B, n_head, d_k, k.shape[2], k.shape[3])
    vh = conv1x1(v, params["w_vs"]).reshape(B, n_head, d_v, k.shape[2], k.shape[3])

    qf = qh.reshape(B, n_head, d_k, -1).transpose(0, 1, 3, 2)
    kf = kh.reshape(B, n_head, d_k, -1)
    vf = vh.reshape(B, n_head, d_v, -1).transpose(0, 1, 3, 2)
    N = kf.shape[-1]
    attn = jnp.matmul(qf / jnp.sqrt(jnp.float32(N)), kf, precision=HI)
    attn = jax.nn.softmax(attn, axis=-1)
    out = jnp.matmul(attn, vf, precision=HI)                  # (B, nh, Nq, d_v)
    out = out.transpose(0, 1, 3, 2).reshape(B, n_head * d_v, H, W)
    out = conv1x1(out, params["fc"])
    out2 = conv1x1(jnp.maximum(conv1x1(out, params["w1"], params["b1"]), 0.0),
                   params["w2"], params["b2"])
    out = out + out2
    mean = jnp.mean(out, axis=(0, 2, 3), keepdims=True)
    var = jnp.mean(jnp.square(out - mean), axis=(0, 2, 3), keepdims=True)
    out = (out - mean) / jnp.sqrt(var + 1e-5)
    out = out * params["gamma"][None, :, None, None] + params["beta"][None, :, None, None]
    return out


# ---------------------------------------------------------------------------
# main
# ---------------------------------------------------------------------------

if __name__ == "__main__":
    B, C, H, W = 2, 32, 16, 16
    n_head = 4
    d = C // n_head

    key = jax.random.PRNGKey(0)
    ks = jax.random.split(key, 13)

    def w_init(kk, o, i):
        return jax.random.normal(kk, (o, i), jnp.float32) / np.sqrt(i)

    params = {
        "w_qs": w_init(ks[0], n_head * d, C),
        "w_ks": w_init(ks[1], n_head * d, C),
        "w_vs": w_init(ks[2], n_head * d, C),
        "fc":   w_init(ks[3], C, n_head * d),
        "w1":   w_init(ks[4], C, C),
        "b1":   0.1 * jax.random.normal(ks[5], (C,), jnp.float32),
        "w2":   w_init(ks[6], C, C),
        "b2":   0.1 * jax.random.normal(ks[7], (C,), jnp.float32),
        "gamma": 1.0 + 0.1 * jax.random.normal(ks[8], (C,), jnp.float32),
        "beta": 0.1 * jax.random.normal(ks[9], (C,), jnp.float32),
    }
    q = jax.random.normal(ks[10], (B, C, H, W), jnp.float32)
    k = jax.random.normal(ks[11], (B, C, H, W), jnp.float32)
    v = jax.random.normal(ks[12], (B, C, H, W), jnp.float32)

    # Positional encoding: value/batch independent -> computed ONCE per spatial
    # shape and reused for q and k (and across forward calls).
    pos = jax.block_until_ready(pos_en_sine(H, W, C // 2))     # (C, H*W)
    pos_ref = _reference_pos_en_sine(C // 2, H, W)
    np.testing.assert_allclose(np.asarray(pos).reshape(C, H, W), pos_ref,
                               rtol=1e-5, atol=5e-5)

    ref = jax.block_until_ready(_reference_forward(params, q, k, v,
                                                   n_head=n_head))

    # Exact-math path (f32 MXU operands) validates the kernel semantics.
    fwd_f32 = jax.jit(functools.partial(transformer_decoder_unit_forward,
                                        n_head=n_head, mxu_dtype=jnp.float32))
    out_f32 = jax.block_until_ready(fwd_f32(params, q, k, v, pos, pos))
    assert out_f32.shape == ref.shape, (out_f32.shape, ref.shape)
    np.testing.assert_allclose(np.asarray(out_f32), np.asarray(ref),
                               rtol=2e-3, atol=2e-3)

    # Performance path: bf16 MXU operands, f32 accumulation / softmax / BN.
    # bf16 operand rounding (~2^-9) gets amplified by the final BatchNorm
    # rescale, so validate with an RMS criterion (expected ~1e-2).
    fwd_bf16 = jax.jit(functools.partial(transformer_decoder_unit_forward,
                                         n_head=n_head, mxu_dtype=jnp.bfloat16))
    out_bf16 = jax.block_until_ready(fwd_bf16(params, q, k, v, pos, pos))
    err = np.asarray(out_bf16) - np.asarray(ref)
    rel_rms = float(np.sqrt(np.mean(err ** 2) / np.mean(np.asarray(ref) ** 2)))
    max_abs = float(np.max(np.abs(err)))
    assert rel_rms < 2.5e-2, f"bf16 path rel-RMS error too high: {rel_rms}"
    assert max_abs < 2.5e-1, f"bf16 path max-abs error too high: {max_abs}"

    print("KERNEL_OK")
</pallas_src>

<mosaic_0001>
module attributes {stable_mosaic.version = 11 : i64} {
  func.func @_pos_en_sine_kernel(%arg0: i32, %arg1: memref<1x256xf32, #tpu.memory_space<vmem>>, %arg2: memref<1x256xf32, #tpu.memory_space<vmem>>, %arg3: memref<32x1xf32, #tpu.memory_space<vmem>>, %arg4: memref<32x1xf32, #tpu.memory_space<vmem>>, %arg5: memref<32x256xf32, #tpu.memory_space<vmem>>) attributes {dimension_semantics = [#tpu.dimension_semantics<parallel>], iteration_bounds = array<i64: 1>, scalar_prefetch = 0 : i64, scratch_operands = 0 : i64, tpu.core_type = #tpu.core_type<tc>, window_params = [{transform_indices = @transform_0, window_bounds = array<i64: 1, 256>}, {transform_indices = @transform_1, window_bounds = array<i64: 1, 256>}, {pipeline_mode = #tpu.pipeline_mode<synchronous>, transform_indices = @transform_2, window_bounds = array<i64: 32, 1>}, {pipeline_mode = #tpu.pipeline_mode<synchronous>, transform_indices = @transform_3, window_bounds = array<i64: 32, 1>}, {transform_indices = @transform_4, window_bounds = array<i64: 32, 256>}]} {
    %0 = tpu.iota {dimensions = array<i32: 0>} : vector<32x1xi32>
    %c16_i32 = arith.constant 16 : i32
    %1 = vector.broadcast %c16_i32 : i32 to vector<32x1xi32>
    %2 = arith.cmpi slt, %0, %1 : vector<32x1xi32>
    %c0 = arith.constant 0 : index
    %c0_0 = arith.constant 0 : index
    %3 = vector.load %arg1[%c0, %c0_0] : memref<1x256xf32, #tpu.memory_space<vmem>>, vector<1x256xf32>
    %c0_1 = arith.constant 0 : index
    %c0_2 = arith.constant 0 : index
    %4 = vector.load %arg2[%c0_1, %c0_2] : memref<1x256xf32, #tpu.memory_space<vmem>>, vector<1x256xf32>
    %5 = vector.shape_cast %2 : vector<32x1xi1> to vector<32x1xi1>
    %6 = vector.broadcast %5 : vector<32x1xi1> to vector<32x256xi1>
    %7 = vector.shape_cast %3 : vector<1x256xf32> to vector<1x256xf32>
    %8 = vector.broadcast %7 : vector<1x256xf32> to vector<32x256xf32>
    %9 = vector.shape_cast %4 : vector<1x256xf32> to vector<1x256xf32>
    %10 = vector.broadcast %9 : vector<1x256xf32> to vector<32x256xf32>
    %11 = arith.select %6, %8, %10 : vector<32x256xi1>, vector<32x256xf32>
    %c0_3 = arith.constant 0 : index
    %c0_4 = arith.constant 0 : index
    %12 = vector.load %arg3[%c0_3, %c0_4] : memref<32x1xf32, #tpu.memory_space<vmem>>, vector<32x1xf32>
    %13 = vector.broadcast %12 : vector<32x1xf32> to vector<32x256xf32>
    %14 = arith.mulf %11, %13 : vector<32x256xf32>
    %c0_5 = arith.constant 0 : index
    %c0_6 = arith.constant 0 : index
    %15 = vector.load %arg4[%c0_5, %c0_6] : memref<32x1xf32, #tpu.memory_space<vmem>>, vector<32x1xf32>
    %16 = vector.broadcast %15 : vector<32x1xf32> to vector<32x256xf32>
    %17 = arith.addf %14, %16 : vector<32x256xf32>
    %18 = math.sin %17 : vector<32x256xf32>
    %c0_7 = arith.constant 0 : index
    %c0_8 = arith.constant 0 : index
    %19 = vector.load %arg5[%c0_7, %c0_8] : memref<32x256xf32, #tpu.memory_space<vmem>>, vector<32x256xf32>
    tpu.vector_store %arg5[%c0_7, %c0_8], %18 {strides = array<i32>} : memref<32x256xf32, #tpu.memory_space<vmem>>, vector<32x256xf32>,
    return
  }
  func.func @transform_0(%arg0: i32) -> (i32, i32) {
    %c0_i32 = arith.constant 0 : i32
    %c0_i32_0 = arith.constant 0 : i32
    return %c0_i32, %arg0 : i32, i32
  }
  func.func @transform_1(%arg0: i32) -> (i32, i32) {
    %c0_i32 = arith.constant 0 : i32
    %c0_i32_0 = arith.constant 0 : i32
    return %c0_i32, %arg0 : i32, i32
  }
  func.func @transform_2(%arg0: i32) -> (i32, i32) {
    %c0_i32 = arith.constant 0 : i32
    %c0_i32_0 = arith.constant 0 : i32
    %c0_i32_1 = arith.constant 0 : i32
    return %c0_i32, %c0_i32_0 : i32, i32
  }
  func.func @transform_3(%arg0: i32) -> (i32, i32) {
    %c0_i32 = arith.constant 0 : i32
    %c0_i32_0 = arith.constant 0 : i32
    %c0_i32_1 = arith.constant 0 : i32
    return %c0_i32, %c0_i32_0 : i32, i32
  }
  func.func @transform_4(%arg0: i32) -> (i32, i32) {
    %c0_i32 = arith.constant 0 : i32
    %c0_i32_0 = arith.constant 0 : i32
    return %c0_i32, %arg0 : i32, i32
  }
}

</mosaic_0001>

<llo_original>
// kernel: tpu_custom_call.1
$region0: #{tpu_custom_call.1}
  #allocation0 [shape = 'u32[]', space=smem, size = 0x4, offset = 0x4, fixed_abs, tag = 'smem constant byte address 0x4 - core index']
  #allocation1 [shape = 'u32[144,128]{1,0:T(1,128)}', space=vmem, size = 0x12000, scoped, tag = 'internal scratch']
  %s0 = inlined_call_operand.vmem [shape: f32[1,256], index: 0, kind: input, shape index: {}]
  %s1 = inlined_call_operand.vmem [shape: f32[1,256], index: 1, kind: input, shape index: {}]
  %s2 = inlined_call_operand.vmem [shape: f32[32,1], index: 2, kind: input, shape index: {}]
  %s3 = inlined_call_operand.vmem [shape: f32[32,1], index: 3, kind: input, shape index: {}]
  %s4 = inlined_call_operand.hbm [shape: f32[32,256], index: 4, kind: output, shape index: {}]
  %s5 = sld [smem:[#allocation0]]
  $region26: #{tpu_custom_call.1} parent=0
    _
  %s7 = ssub.s32 1, %s5
  %s8 = scalar_select 0, %s7, %s5
  $region1: #{tpu_custom_call.1} parent=0
    #allocation2 [shape = 'u8[32768]{0}', space=vmem, size = 0x8000, scoped, tag = 'output window, operand 0, single buffered']
    #allocation3 [shape = 's32[1]{0}', space=sflag, size = 0x4, scoped, tag = 'scoped memory for tpu_custom_call.1']
    %9 = vsyncpa [#allocation3], 0
    // Predicated region
    $region2: #{tpu_custom_call.1} parent=1 // pred_check
      _
    $region3: #{tpu_custom_call.1} parent=1 // pred_check_branch
      %11 = sbr.rel (0) target = $region5
    $region4: #{tpu_custom_call.1} parent=1 // pred_region
      _
    $region5: #{tpu_custom_call.1} parent=1 // pred_fallthru
      _
    // Predicated region
    $region6: #{tpu_custom_call.1} parent=1 // pred_check
      _
    $region7: #{tpu_custom_call.1} parent=1 // pred_check_branch
      %13 = sbr.rel (0) target = $region9
    $region8: #{tpu_custom_call.1} parent=1 // pred_region
      _
    $region9: #{tpu_custom_call.1} parent=1 // pred_fallthru
      _
    // Predicated region
    $region10: #{tpu_custom_call.1} parent=1 // pred_check
      _
    $region11: #{tpu_custom_call.1} parent=1 // pred_check_branch
      %15 = sbr.rel (0) target = $region13
    $region12: #{tpu_custom_call.1} parent=1 // pred_region
      _
    $region13: #{tpu_custom_call.1} parent=1 // pred_fallthru
      _
    // Predicated region
    $region14: #{tpu_custom_call.1} parent=1 // pred_check
      _
    $region15: #{tpu_custom_call.1} parent=1 // pred_check_branch
      %17 = sbr.rel (0) target = $region17
    $region16: #{tpu_custom_call.1} parent=1 // pred_region
      _
    $region17: #{tpu_custom_call.1} parent=1 // pred_fallthru
      _
    %v18 = vlaneseq
    %v19 = vshrl.u32 %v18, 7
    %v20 = vadd.s32 %v19, 8
    %v21 = vadd.s32 %v19, 16
    %v22 = vadd.s32 %v19, 24
    %vm23 = vcmp.lt.s32.totalorder %v19, 16
    %vm24 = vcmp.lt.s32.totalorder %v20, 16
    %vm25 = vcmp.lt.s32.totalorder %v21, 16
    %vm26 = vcmp.lt.s32.totalorder %v22, 16
    %v27 = vld [vmem:[%s0] sm:$0x3]
    %v28 = vld [vmem:[%s1] sm:$0x3]
    %v29 = vsel %vm23, 1, 0
    %v30 = vsel %vm24, 1, 0
    %v31 = vsel %vm25, 1, 0
    %v32 = vsel %vm26, 1, 0
    %vm33 = vcmp.eq.s32.totalorder %v29, 1
    %vm34 = vcmp.eq.s32.totalorder %v30, 1
    %vm35 = vcmp.eq.s32.totalorder %v31, 1
    %vm36 = vcmp.eq.s32.totalorder %v32, 1
    %v38 = vlaneseq
    %v39 = vshrl.u32 %v38, 7
    %v40 = vsub.s32 0, %v39
    %v41 = vrot.slane %v27, %v40
    %v42 = vlaneseq
    %v43 = vshrl.u32 %v42, 7
    %v44 = vsub.s32 1, %v43
    %v45 = vrot.slane %v27, %v44
    %v49 = vlaneseq
    %v50 = vshrl.u32 %v49, 7
    %v51 = vsub.s32 0, %v50
    %v52 = vrot.slane %v28, %v51
    %v53 = vlaneseq
    %v54 = vshrl.u32 %v53, 7
    %v55 = vsub.s32 1, %v54
    %v56 = vrot.slane %v28, %v55
    %v59 = vsel %vm33, %v41, %v52
    %v60 = vsel %vm33, %v45, %v56
    %v61 = vsel %vm34, %v41, %v52
    %v62 = vsel %vm34, %v45, %v56
    %v63 = vsel %vm35, %v41, %v52
    %v64 = vsel %vm35, %v45, %v56
    %v65 = vsel %vm36, %v41, %v52
    %v66 = vsel %vm36, %v45, %v56
    %v67 = vld [vmem:[%s2] sm:$0xff]
    %v68 = vld [vmem:[%s2 + $0x8] sm:$0xff]
    %v69 = vld [vmem:[%s2 + $0x10] sm:$0xff]
    %v70 = vld [vmem:[%s2 + $0x18] sm:$0xff]
    %72 = vset.pattern.permute.xlu0 0
    %73 = vperm.xlu0 %72, %v67
    %v74 = vpop.permute.xlu0 %73
    %77 = vset.pattern.permute.xlu0 0
    %78 = vperm.xlu0 %77, %v68
    %v79 = vpop.permute.xlu0 %78
    %82 = vset.pattern.permute.xlu0 0
    %83 = vperm.xlu0 %82, %v69
    %v84 = vpop.permute.xlu0 %83
    %87 = vset.pattern.permute.xlu0 0
    %88 = vperm.xlu0 %87, %v70
    %v89 = vpop.permute.xlu0 %88
    %v91 = vmul.f32 %v59, %v74
    %v92 = vmul.f32 %v60, %v74
    %v93 = vmul.f32 %v61, %v79
    %v94 = vmul.f32 %v62, %v79
    %v95 = vmul.f32 %v63, %v84
    %v96 = vmul.f32 %v64, %v84
    %v97 = vmul.f32 %v65, %v89
    %v98 = vmul.f32 %v66, %v89
    %v99 = vld [vmem:[%s3] sm:$0xff]
    %v100 = vld [vmem:[%s3 + $0x8] sm:$0xff]
    %v101 = vld [vmem:[%s3 + $0x10] sm:$0xff]
    %v102 = vld [vmem:[%s3 + $0x18] sm:$0xff]
    %104 = vset.pattern.permute.xlu0 0
    %105 = vperm.xlu0 %104, %v99
    %v106 = vpop.permute.xlu0 %105
    %109 = vset.pattern.permute.xlu0 0
    %110 = vperm.xlu0 %109, %v100
    %v111 = vpop.permute.xlu0 %110
    %114 = vset.pattern.permute.xlu0 0
    %115 = vperm.xlu0 %114, %v101
    %v116 = vpop.permute.xlu0 %115
    %119 = vset.pattern.permute.xlu0 0
    %120 = vperm.xlu0 %119, %v102
    %v121 = vpop.permute.xlu0 %120
    %v123 = vadd.f32 %v91, %v106
    %v124 = vadd.f32 %v92, %v106
    %v125 = vadd.f32 %v93, %v111
    %v126 = vadd.f32 %v94, %v111
    %v127 = vadd.f32 %v95, %v116
    %v128 = vadd.f32 %v96, %v116
    %v129 = vadd.f32 %v97, %v121
    %v130 = vadd.f32 %v98, %v121
    %v131 = vand.u32 2147483647, %v123
    %vm132 = vcmp.le.f32.partialorder %v131, 0.7853982
    %vm133 = vcmp.lt.s32.totalorder %v123, 0
    %v134 = vand.u32 %v123, 2139095040
    %v135 = vshrl.u32 %v134, 23
    %v136 = vsub.s32 %v135, 127
    %v137 = vand.u32 2147483647, %v123
    %v138 = vand.u32 %v137, 8388607
    %v139 = vor.u32 %v138, 8388608
    %v140 = vsub.s32 0, %v139
    %v141 = vadd.s32 %v136, 1
    %vm142 = vcmp.gt.s32.totalorder %v141, 0
    %v143 = vsel %vm142, %v141, 0
    %v144 = vshrl.u32 %v143, 5
    %v145 = vand.u32 %v143, 31
    %v146 = vsub.s32 32, %v145
    %v147 = vshrl.u32 683565275, %v146
    %v148 = vshll.u32 683565275, %v145
    %v149 = vshrl.u32 2475754826, %v146
    %v150 = vor.u32 %v148, %v149
    %v151 = vshll.u32 2475754826, %v145
    %v152 = vshrl.u32 2131351028, %v146
    %v153 = vor.u32 %v151, %v152
    %v154 = vshll.u32 2131351028, %v145
    %v155 = vshrl.u32 2102212464, %v146
    %v156 = vor.u32 %v154, %v155
    %v157 = vshll.u32 2102212464, %v145
    %v158 = vshrl.u32 920167782, %v146
    %v159 = vor.u32 %v157, %v158
    %v160 = vshll.u32 920167782, %v145
    %v161 = vshrl.u32 1326507024, %v146
    %v162 = vor.u32 %v160, %v161
    %vm163 = vcmp.lt.s32.totalorder %v144, 1
    %vm164 = vcmp.lt.s32.totalorder %v144, 2
    %vm165 = vcmp.lt.s32.totalorder %v144, 3
    %vm166 = vcmp.lt.s32.totalorder %v144, 4
    %v167 = vsel %vm163, %v147, %v150
    %v168 = vsel %vm166, %v156, 2102212464
    %v169 = vsel %vm165, %v153, %v168
    %v170 = vsel %vm164, %v167, %v169
    %v171 = vsel %vm163, %v150, %v153
    %v172 = vsel %vm166, %v159, 920167782
    %v173 = vsel %vm165, %v156, %v172
    %v174 = vsel %vm164, %v171, %v173
    %v175 = vsel %vm163, %v153, %v156
    %v176 = vsel %vm166, %v162, 1326507024
    %v177 = vsel %vm165, %v159, %v176
    %v178 = vsel %vm164, %v175, %v177
    %v179 = vshll.u32 %v139, 8
    %v180 = vmul.u32.u64.compose %v179, %v178
    %v181 = vextract.low.u32 %v180
    %v182 = vextract.high.u32 %v180
    %v183 = vmul.u32.u64.compose %v179, %v174
    %v184 = vextract.low.u32 %v183
    %v185 = vextract.high.u32 %v183
    %v186 = vmul.u32 %v179, %v170
    %v187 = vadd.s32 %v182, %v184
    %vm188 = vc.u32 %v182, %v184
    %v189 = vadd.s32 %v185, 1
    %v190 = vsel %vm188, %v189, %v185
    %v191 = vadd.s32 %v186, %v190
    %v192 = vadd.s32 %v191, 536870912
    %v193 = vshrl.u32 %v192, 30
    %v194 = vshll.u32 %v193, 30
    %v195 = vsub.s32 %v191, %v194
    %vm196 = vcmp.lt.s32.totalorder %v195, 0
    %v197 = vsub.s32 0, %v195
    %v198 = vsel %vm196, %v197, %v195
    %v199 = vclz %v198
    %v200 = vsub.s32 %v199, 2
    %vm201 = vcmp.gt.s32.totalorder 0, %v200
    %v202 = vsel %vm201, 0, %v200
    %v203 = vsub.s32 32, %v202
    %v204 = vshll.u32 %v195, %v202
    %v205 = vshrl.u32 %v187, %v203
    %v206 = vor.u32 %v204, %v205
    %v207 = vsub.s32 4294967266, %v202
    %v208 = vadd.s32 %v207, 127
    %v209 = vshll.u32 %v208, 23
    %v210 = vor.u32 4788187, %v209
    %v211 = vand.u32 2147483647, %v210
    %v213 = vcvt.s32.f32 %v206
    %v214 = vmul.f32 %v213, %v211
    %v215 = vxor.u32 %v214, 2147483648
    %v216 = vsel %vm133, %v215, %v214
    %v217 = vsub.s32 4, %v193
    %v218 = vsel %vm133, %v217, %v193
    %v219 = vsel %vm132, %v123, %v216
    %v220 = vsel %vm132, 0, %v218
    %v221 = vcosq.f32.pop %v219
    %v222 = vsinq.f32.pop %v219
    %vm223 = vweird.f32 %v123
    %v224 = vadd.s32 %v220, 3
    %v225 = vand.u32 %v224, 3
    %vm226 = vcmp.lt.s32.totalorder %v225, 2
    %vm227 = vcmp.eq.s32.totalorder %v225, 0
    %v228 = vxor.u32 %v222, 2147483648
    %v229 = vsel %vm227, %v221, %v228
    %vm230 = vcmp.eq.s32.totalorder %v225, 2
    %v231 = vxor.u32 %v221, 2147483648
    %v232 = vsel %vm230, %v231, %v222
    %v233 = vsel %vm226, %v229, %v232
    %v234 = vsel %vm223, nan, %v233
    %v235 = vand.u32 2147483647, %v124
    %vm236 = vcmp.le.f32.partialorder %v235, 0.7853982
    %vm237 = vcmp.lt.s32.totalorder %v124, 0
    %v238 = vand.u32 %v124, 2139095040
    %v239 = vshrl.u32 %v238, 23
    %v240 = vsub.s32 %v239, 127
    %v241 = vand.u32 2147483647, %v124
    %v242 = vand.u32 %v241, 8388607
    %v243 = vor.u32 %v242, 8388608
    %v244 = vsub.s32 0, %v243
    %v245 = vadd.s32 %v240, 1
    %vm246 = vcmp.gt.s32.totalorder %v245, 0
    %v247 = vsel %vm246, %v245, 0
    %v248 = vshrl.u32 %v247, 5
    %v249 = vand.u32 %v247, 31
    %v250 = vsub.s32 32, %v249
    %v251 = vshrl.u32 683565275, %v250
    %v252 = vshll.u32 683565275, %v249
    %v253 = vshrl.u32 2475754826, %v250
    %v254 = vor.u32 %v252, %v253
    %v255 = vshll.u32 2475754826, %v249
    %v256 = vshrl.u32 2131351028, %v250
    %v257 = vor.u32 %v255, %v256
    %v258 = vshll.u32 2131351028, %v249
    %v259 = vshrl.u32 2102212464, %v250
    %v260 = vor.u32 %v258, %v259
    %v261 = vshll.u32 2102212464, %v249
    %v262 = vshrl.u32 920167782, %v250
    %v263 = vor.u32 %v261, %v262
    %v264 = vshll.u32 920167782, %v249
    %v265 = vshrl.u32 1326507024, %v250
    %v266 = vor.u32 %v264, %v265
    %vm267 = vcmp.lt.s32.totalorder %v248, 1
    %vm268 = vcmp.lt.s32.totalorder %v248, 2
    %vm269 = vcmp.lt.s32.totalorder %v248, 3
    %vm270 = vcmp.lt.s32.totalorder %v248, 4
    %v271 = vsel %vm267, %v251, %v254
    %v272 = vsel %vm270, %v260, 2102212464
    %v273 = vsel %vm269, %v257, %v272
    %v274 = vsel %vm268, %v271, %v273
    %v275 = vsel %vm267, %v254, %v257
    %v276 = vsel %vm270, %v263, 920167782
    %v277 = vsel %vm269, %v260, %v276
    %v278 = vsel %vm268, %v275, %v277
    %v279 = vsel %vm267, %v257, %v260
    %v280 = vsel %vm270, %v266, 1326507024
    %v281 = vsel %vm269, %v263, %v280
    %v282 = vsel %vm268, %v279, %v281
    %v283 = vshll.u32 %v243, 8
    %v284 = vmul.u32.u64.compose %v283, %v282
    %v285 = vextract.low.u32 %v284
    %v286 = vextract.high.u32 %v284
    %v287 = vmul.u32.u64.compose %v283, %v278
    %v288 = vextract.low.u32 %v287
    %v289 = vextract.high.u32 %v287
    %v290 = vmul.u32 %v283, %v274
    %v291 = vadd.s32 %v286, %v288
    %vm292 = vc.u32 %v286, %v288
    %v293 = vadd.s32 %v289, 1
    %v294 = vsel %vm292, %v293, %v289
    %v295 = vadd.s32 %v290, %v294
    %v296 = vadd.s32 %v295, 536870912
    %v297 = vshrl.u32 %v296, 30
    %v298 = vshll.u32 %v297, 30
    %v299 = vsub.s32 %v295, %v298
    %vm300 = vcmp.lt.s32.totalorder %v299, 0
    %v301 = vsub.s32 0, %v299
    %v302 = vsel %vm300, %v301, %v299
    %v303 = vclz %v302
    %v304 = vsub.s32 %v303, 2
    %vm305 = vcmp.gt.s32.totalorder 0, %v304
    %v306 = vsel %vm305, 0, %v304
    %v307 = vsub.s32 32, %v306
    %v308 = vshll.u32 %v299, %v306
    %v309 = vshrl.u32 %v291, %v307
    %v310 = vor.u32 %v308, %v309
    %v311 = vsub.s32 4294967266, %v306
    %v312 = vadd.s32 %v311, 127
    %v313 = vshll.u32 %v312, 23
    %v314 = vor.u32 4788187, %v313
    %v315 = vand.u32 2147483647, %v314
    %v317 = vcvt.s32.f32 %v310
    %v318 = vmul.f32 %v317, %v315
    %v319 = vxor.u32 %v318, 2147483648
    %v320 = vsel %vm237, %v319, %v318
    %v321 = vsub.s32 4, %v297
    %v322 = vsel %vm237, %v321, %v297
    %v323 = vsel %vm236, %v124, %v320
    %v324 = vsel %vm236, 0, %v322
    %v325 = vcosq.f32.pop %v323
    %v326 = vsinq.f32.pop %v323
    %vm327 = vweird.f32 %v124
    %v328 = vadd.s32 %v324, 3
    %v329 = vand.u32 %v328, 3
    %vm330 = vcmp.lt.s32.totalorder %v329, 2
    %vm331 = vcmp.eq.s32.totalorder %v329, 0
    %v332 = vxor.u32 %v326, 2147483648
    %v333 = vsel %vm331, %v325, %v332
    %vm334 = vcmp.eq.s32.totalorder %v329, 2
    %v335 = vxor.u32 %v325, 2147483648
    %v336 = vsel %vm334, %v335, %v326
    %v337 = vsel %vm330, %v333, %v336
    %v338 = vsel %vm327, nan, %v337
    %v339 = vand.u32 2147483647, %v125
    %vm340 = vcmp.le.f32.partialorder %v339, 0.7853982
    %vm341 = vcmp.lt.s32.totalorder %v125, 0
    %v342 = vand.u32 %v125, 2139095040
    %v343 = vshrl.u32 %v342, 23
    %v344 = vsub.s32 %v343, 127
    %v345 = vand.u32 2147483647, %v125
    %v346 = vand.u32 %v345, 8388607
    %v347 = vor.u32 %v346, 8388608
    %v348 = vsub.s32 0, %v347
    %v349 = vadd.s32 %v344, 1
    %vm350 = vcmp.gt.s32.totalorder %v349, 0
    %v351 = vsel %vm350, %v349, 0
    %v352 = vshrl.u32 %v351, 5
    %v353 = vand.u32 %v351, 31
    %v354 = vsub.s32 32, %v353
    %v355 = vshrl.u32 683565275, %v354
    %v356 = vshll.u32 683565275, %v353
    %v357 = vshrl.u32 2475754826, %v354
    %v358 = vor.u32 %v356, %v357
    %v359 = vshll.u32 2475754826, %v353
    %v360 = vshrl.u32 2131351028, %v354
    %v361 = vor.u32 %v359, %v360
    %v362 = vshll.u32 2131351028, %v353
    %v363 = vshrl.u32 2102212464, %v354
    %v364 = vor.u32 %v362, %v363
    %v365 = vshll.u32 2102212464, %v353
    %v366 = vshrl.u32 920167782, %v354
    %v367 = vor.u32 %v365, %v366
    %v368 = vshll.u32 920167782, %v353
    %v369 = vshrl.u32 1326507024, %v354
    %v370 = vor.u32 %v368, %v369
    %vm371 = vcmp.lt.s32.totalorder %v352, 1
    %vm372 = vcmp.lt.s32.totalorder %v352, 2
    %vm373 = vcmp.lt.s32.totalorder %v352, 3
    %vm374 = vcmp.lt.s32.totalorder %v352, 4
    %v375 = vsel %vm371, %v355, %v358
    %v376 = vsel %vm374, %v364, 2102212464
    %v377 = vsel %vm373, %v361, %v376
    %v378 = vsel %vm372, %v375, %v377
    %v379 = vsel %vm371, %v358, %v361
    %v380 = vsel %vm374, %v367, 920167782
    %v381 = vsel %vm373, %v364, %v380
    %v382 = vsel %vm372, %v379, %v381
    %v383 = vsel %vm371, %v361, %v364
    %v384 = vsel %vm374, %v370, 1326507024
    %v385 = vsel %vm373, %v367, %v384
    %v386 = vsel %vm372, %v383, %v385
    %v387 = vshll.u32 %v347, 8
    %v388 = vmul.u32.u64.compose %v387, %v386
    %v389 = vextract.low.u32 %v388
    %v390 = vextract.high.u32 %v388
    %v391 = vmul.u32.u64.compose %v387, %v382
    %v392 = vextract.low.u32 %v391
    %v393 = vextract.high.u32 %v391
    %v394 = vmul.u32 %v387, %v378
    %v395 = vadd.s32 %v390, %v392
    %vm396 = vc.u32 %v390, %v392
    %v397 = vadd.s32 %v393, 1
    %v398 = vsel %vm396, %v397, %v393
    %v399 = vadd.s32 %v394, %v398
    %v400 = vadd.s32 %v399, 536870912
    %v401 = vshrl.u32 %v400, 30
    %v402 = vshll.u32 %v401, 30
    %v403 = vsub.s32 %v399, %v402
    %vm404 = vcmp.lt.s32.totalorder %v403, 0
    %v405 = vsub.s32 0, %v403
    %v406 = vsel %vm404, %v405, %v403
    %v407 = vclz %v406
    %v408 = vsub.s32 %v407, 2
    %vm409 = vcmp.gt.s32.totalorder 0, %v408
    %v410 = vsel %vm409, 0, %v408
    %v411 = vsub.s32 32, %v410
    %v412 = vshll.u32 %v403, %v410
    %v413 = vshrl.u32 %v395, %v411
    %v414 = vor.u32 %v412, %v413
    %v415 = vsub.s32 4294967266, %v410
    %v416 = vadd.s32 %v415, 127
    %v417 = vshll.u32 %v416, 23
    %v418 = vor.u32 4788187, %v417
    %v419 = vand.u32 2147483647, %v418
    %v421 = vcvt.s32.f32 %v414
    %v422 = vmul.f32 %v421, %v419
    %v423 = vxor.u32 %v422, 2147483648
    %v424 = vsel %vm341, %v423, %v422
    %v425 = vsub.s32 4, %v401
    %v426 = vsel %vm341, %v425, %v401
    %v427 = vsel %vm340, %v125, %v424
    %v428 = vsel %vm340, 0, %v426
    %v429 = vcosq.f32.pop %v427
    %v430 = vsinq.f32.pop %v427
    %vm431 = vweird.f32 %v125
    %v432 = vadd.s32 %v428, 3
    %v433 = vand.u32 %v432, 3
    %vm434 = vcmp.lt.s32.totalorder %v433, 2
    %vm435 = vcmp.eq.s32.totalorder %v433, 0
    %v436 = vxor.u32 %v430, 2147483648
    %v437 = vsel %vm435, %v429, %v436
    %vm438 = vcmp.eq.s32.totalorder %v433, 2
    %v439 = vxor.u32 %v429, 2147483648
    %v440 = vsel %vm438, %v439, %v430
    %v441 = vsel %vm434, %v437, %v440
    %v442 = vsel %vm431, nan, %v441
    %v443 = vand.u32 2147483647, %v126
    %vm444 = vcmp.le.f32.partialorder %v443, 0.7853982
    %vm445 = vcmp.lt.s32.totalorder %v126, 0
    %v446 = vand.u32 %v126, 2139095040
    %v447 = vshrl.u32 %v446, 23
    %v448 = vsub.s32 %v447, 127
    %v449 = vand.u32 2147483647, %v126
    %v450 = vand.u32 %v449, 8388607
    %v451 = vor.u32 %v450, 8388608
    %v452 = vsub.s32 0, %v451
    %v453 = vadd.s32 %v448, 1
    %vm454 = vcmp.gt.s32.totalorder %v453, 0
    %v455 = vsel %vm454, %v453, 0
    %v456 = vshrl.u32 %v455, 5
    %v457 = vand.u32 %v455, 31
    %v458 = vsub.s32 32, %v457
    %v459 = vshrl.u32 683565275, %v458
    %v460 = vshll.u32 683565275, %v457
    %v461 = vshrl.u32 2475754826, %v458
    %v462 = vor.u32 %v460, %v461
    %v463 = vshll.u32 2475754826, %v457
    %v464 = vshrl.u32 2131351028, %v458
    %v465 = vor.u32 %v463, %v464
    %v466 = vshll.u32 2131351028, %v457
    %v467 = vshrl.u32 2102212464, %v458
    %v468 = vor.u32 %v466, %v467
    %v469 = vshll.u32 2102212464, %v457
    %v470 = vshrl.u32 920167782, %v458
    %v471 = vor.u32 %v469, %v470
    %v472 = vshll.u32 920167782, %v457
    %v473 = vshrl.u32 1326507024, %v458
    %v474 = vor.u32 %v472, %v473
    %vm475 = vcmp.lt.s32.totalorder %v456, 1
    %vm476 = vcmp.lt.s32.totalorder %v456, 2
    %vm477 = vcmp.lt.s32.totalorder %v456, 3
    %vm478 = vcmp.lt.s32.totalorder %v456, 4
    %v479 = vsel %vm475, %v459, %v462
    %v480 = vsel %vm478, %v468, 2102212464
    %v481 = vsel %vm477, %v465, %v480
    %v482 = vsel %vm476, %v479, %v481
    %v483 = vsel %vm475, %v462, %v465
    %v484 = vsel %vm478, %v471, 920167782
    %v485 = vsel %vm477, %v468, %v484
    %v486 = vsel %vm476, %v483, %v485
    %v487 = vsel %vm475, %v465, %v468
    %v488 = vsel %vm478, %v474, 1326507024
    %v489 = vsel %vm477, %v471, %v488
    %v490 = vsel %vm476, %v487, %v489
    %v491 = vshll.u32 %v451, 8
    %v492 = vmul.u32.u64.compose %v491, %v490
    %v493 = vextract.low.u32 %v492
    %v494 = vextract.high.u32 %v492
    %v495 = vmul.u32.u64.compose %v491, %v486
    %v496 = vextract.low.u32 %v495
    %v497 = vextract.high.u32 %v495
    %v498 = vmul.u32 %v491, %v482
    %v499 = vadd.s32 %v494, %v496
    %vm500 = vc.u32 %v494, %v496
    %v501 = vadd.s32 %v497, 1
    %v502 = vsel %vm500, %v501, %v497
    %v503 = vadd.s32 %v498, %v502
    %v504 = vadd.s32 %v503, 536870912
    %v505 = vshrl.u32 %v504, 30
    %v506 = vshll.u32 %v505, 30
    %v507 = vsub.s32 %v503, %v506
    %vm508 = vcmp.lt.s32.totalorder %v507, 0
    %v509 = vsub.s32 0, %v507
    %v510 = vsel %vm508, %v509, %v507
    %v511 = vclz %v510
    %v512 = vsub.s32 %v511, 2
    %vm513 = vcmp.gt.s32.totalorder 0, %v512
    %v514 = vsel %vm513, 0, %v512
    %v515 = vsub.s32 32, %v514
    %v516 = vshll.u32 %v507, %v514
    %v517 = vshrl.u32 %v499, %v515
    %v518 = vor.u32 %v516, %v517
    %v519 = vsub.s32 4294967266, %v514
    %v520 = vadd.s32 %v519, 127
    %v521 = vshll.u32 %v520, 23
    %v522 = vor.u32 4788187, %v521
    %v523 = vand.u32 2147483647, %v522
    %v525 = vcvt.s32.f32 %v518
    %v526 = vmul.f32 %v525, %v523
    %v527 = vxor.u32 %v526, 2147483648
    %v528 = vsel %vm445, %v527, %v526
    %v529 = vsub.s32 4, %v505
    %v530 = vsel %vm445, %v529, %v505
    %v531 = vsel %vm444, %v126, %v528
    %v532 = vsel %vm444, 0, %v530
    %v533 = vcosq.f32.pop %v531
    %v534 = vsinq.f32.pop %v531
    %vm535 = vweird.f32 %v126
    %v536 = vadd.s32 %v532, 3
    %v537 = vand.u32 %v536, 3
    %vm538 = vcmp.lt.s32.totalorder %v537, 2
    %vm539 = vcmp.eq.s32.totalorder %v537, 0
    %v540 = vxor.u32 %v534, 2147483648
    %v541 = vsel %vm539, %v533, %v540
    %vm542 = vcmp.eq.s32.totalorder %v537, 2
    %v543 = vxor.u32 %v533, 2147483648
    %v544 = vsel %vm542, %v543, %v534
    %v545 = vsel %vm538, %v541, %v544
    %v546 = vsel %vm535, nan, %v545
    %v547 = vand.u32 2147483647, %v127
    %vm548 = vcmp.le.f32.partialorder %v547, 0.7853982
    %vm549 = vcmp.lt.s32.totalorder %v127, 0
    %v550 = vand.u32 %v127, 2139095040
    %v551 = vshrl.u32 %v550, 23
    %v552 = vsub.s32 %v551, 127
    %v553 = vand.u32 2147483647, %v127
    %v554 = vand.u32 %v553, 8388607
    %v555 = vor.u32 %v554, 8388608
    %v556 = vsub.s32 0, %v555
    %v557 = vadd.s32 %v552, 1
    %vm558 = vcmp.gt.s32.totalorder %v557, 0
    %v559 = vsel %vm558, %v557, 0
    %v560 = vshrl.u32 %v559, 5
    %v561 = vand.u32 %v559, 31
    %v562 = vsub.s32 32, %v561
    %v563 = vshrl.u32 683565275, %v562
    %v564 = vshll.u32 683565275, %v561
    %v565 = vshrl.u32 2475754826, %v562
    %v566 = vor.u32 %v564, %v565
    %v567 = vshll.u32 2475754826, %v561
    %v568 = vshrl.u32 2131351028, %v562
    %v569 = vor.u32 %v567, %v568
    %v570 = vshll.u32 2131351028, %v561
    %v571 = vshrl.u32 2102212464, %v562
    %v572 = vor.u32 %v570, %v571
    %v573 = vshll.u32 2102212464, %v561
    %v574 = vshrl.u32 920167782, %v562
    %v575 = vor.u32 %v573, %v574
    %v576 = vshll.u32 920167782, %v561
    %v577 = vshrl.u32 1326507024, %v562
    %v578 = vor.u32 %v576, %v577
    %vm579 = vcmp.lt.s32.totalorder %v560, 1
    %vm580 = vcmp.lt.s32.totalorder %v560, 2
    %vm581 = vcmp.lt.s32.totalorder %v560, 3
    %vm582 = vcmp.lt.s32.totalorder %v560, 4
    %v583 = vsel %vm579, %v563, %v566
    %v584 = vsel %vm582, %v572, 2102212464
    %v585 = vsel %vm581, %v569, %v584
    %v586 = vsel %vm580, %v583, %v585
    %v587 = vsel %vm579, %v566, %v569
    %v588 = vsel %vm582, %v575, 920167782
    %v589 = vsel %vm581, %v572, %v588
    %v590 = vsel %vm580, %v587, %v589
    %v591 = vsel %vm579, %v569, %v572
    %v592 = vsel %vm582, %v578, 1326507024
    %v593 = vsel %vm581, %v575, %v592
    %v594 = vsel %vm580, %v591, %v593
    %v595 = vshll.u32 %v555, 8
    %v596 = vmul.u32.u64.compose %v595, %v594
    %v597 = vextract.low.u32 %v596
    %v598 = vextract.high.u32 %v596
    %v599 = vmul.u32.u64.compose %v595, %v590
    %v600 = vextract.low.u32 %v599
    %v601 = vextract.high.u32 %v599
    %v602 = vmul.u32 %v595, %v586
    %v603 = vadd.s32 %v598, %v600
    %vm604 = vc.u32 %v598, %v600
    %v605 = vadd.s32 %v601, 1
    %v606 = vsel %vm604, %v605, %v601
    %v607 = vadd.s32 %v602, %v606
    %v608 = vadd.s32 %v607, 536870912
    %v609 = vshrl.u32 %v608, 30
    %v610 = vshll.u32 %v609, 30
    %v611 = vsub.s32 %v607, %v610
    %vm612 = vcmp.lt.s32.totalorder %v611, 0
    %v613 = vsub.s32 0, %v611
    %v614 = vsel %vm612, %v613, %v611
    %v615 = vclz %v614
    %v616 = vsub.s32 %v615, 2
    %vm617 = vcmp.gt.s32.totalorder 0, %v616
    %v618 = vsel %vm617, 0, %v616
    %v619 = vsub.s32 32, %v618
    %v620 = vshll.u32 %v611, %v618
    %v621 = vshrl.u32 %v603, %v619
    %v622 = vor.u32 %v620, %v621
    %v623 = vsub.s32 4294967266, %v618
    %v624 = vadd.s32 %v623, 127
    %v625 = vshll.u32 %v624, 23
    %v626 = vor.u32 4788187, %v625
    %v627 = vand.u32 2147483647, %v626
    %v629 = vcvt.s32.f32 %v622
    %v630 = vmul.f32 %v629, %v627
    %v631 = vxor.u32 %v630, 2147483648
    %v632 = vsel %vm549, %v631, %v630
    %v633 = vsub.s32 4, %v609
    %v634 = vsel %vm549, %v633, %v609
    %v635 = vsel %vm548, %v127, %v632
    %v636 = vsel %vm548, 0, %v634
    %v637 = vcosq.f32.pop %v635
    %v638 = vsinq.f32.pop %v635
    %vm639 = vweird.f32 %v127
    %v640 = vadd.s32 %v636, 3
    %v641 = vand.u32 %v640, 3
    %vm642 = vcmp.lt.s32.totalorder %v641, 2
    %vm643 = vcmp.eq.s32.totalorder %v641, 0
    %v644 = vxor.u32 %v638, 2147483648
    %v645 = vsel %vm643, %v637, %v644
    %vm646 = vcmp.eq.s32.totalorder %v641, 2
    %v647 = vxor.u32 %v637, 2147483648
    %v648 = vsel %vm646, %v647, %v638
    %v649 = vsel %vm642, %v645, %v648
    %v650 = vsel %vm639, nan, %v649
    %v651 = vand.u32 2147483647, %v128
    %vm652 = vcmp.le.f32.partialorder %v651, 0.7853982
    %vm653 = vcmp.lt.s32.totalorder %v128, 0
    %v654 = vand.u32 %v128, 2139095040
    %v655 = vshrl.u32 %v654, 23
    %v656 = vsub.s32 %v655, 127
    %v657 = vand.u32 2147483647, %v128
    %v658 = vand.u32 %v657, 8388607
    %v659 = vor.u32 %v658, 8388608
    %v660 = vsub.s32 0, %v659
    %v661 = vadd.s32 %v656, 1
    %vm662 = vcmp.gt.s32.totalorder %v661, 0
    %v663 = vsel %vm662, %v661, 0
    %v664 = vshrl.u32 %v663, 5
    %v665 = vand.u32 %v663, 31
    %v666 = vsub.s32 32, %v665
    %v667 = vshrl.u32 683565275, %v666
    %v668 = vshll.u32 683565275, %v665
    %v669 = vshrl.u32 2475754826, %v666
    %v670 = vor.u32 %v668, %v669
    %v671 = vshll.u32 2475754826, %v665
    %v672 = vshrl.u32 2131351028, %v666
    %v673 = vor.u32 %v671, %v672
    %v674 = vshll.u32 2131351028, %v665
    %v675 = vshrl.u32 2102212464, %v666
    %v676 = vor.u32 %v674, %v675
    %v677 = vshll.u32 2102212464, %v665
    %v678 = vshrl.u32 920167782, %v666
    %v679 = vor.u32 %v677, %v678
    %v680 = vshll.u32 920167782, %v665
    %v681 = vshrl.u32 1326507024, %v666
    %v682 = vor.u32 %v680, %v681
    %vm683 = vcmp.lt.s32.totalorder %v664, 1
    %vm684 = vcmp.lt.s32.totalorder %v664, 2
    %vm685 = vcmp.lt.s32.totalorder %v664, 3
    %vm686 = vcmp.lt.s32.totalorder %v664, 4
    %v687 = vsel %vm683, %v667, %v670
    %v688 = vsel %vm686, %v676, 2102212464
    %v689 = vsel %vm685, %v673, %v688
    %v690 = vsel %vm684, %v687, %v689
    %v691 = vsel %vm683, %v670, %v673
    %v692 = vsel %vm686, %v679, 920167782
    %v693 = vsel %vm685, %v676, %v692
    %v694 = vsel %vm684, %v691, %v693
    %v695 = vsel %vm683, %v673, %v676
    %v696 = vsel %vm686, %v682, 1326507024
    %v697 = vsel %vm685, %v679, %v696
    %v698 = vsel %vm684, %v695, %v697
    %v699 = vshll.u32 %v659, 8
    %v700 = vmul.u32.u64.compose %v699, %v698
    %v701 = vextract.low.u32 %v700
    %v702 = vextract.high.u32 %v700
    %v703 = vmul.u32.u64.compose %v699, %v694
    %v704 = vextract.low.u32 %v703
    %v705 = vextract.high.u32 %v703
    %v706 = vmul.u32 %v699, %v690
    %v707 = vadd.s32 %v702, %v704
    %vm708 = vc.u32 %v702, %v704
    %v709 = vadd.s32 %v705, 1
    %v710 = vsel %vm708, %v709, %v705
    %v711 = vadd.s32 %v706, %v710
    %v712 = vadd.s32 %v711, 536870912
    %v713 = vshrl.u32 %v712, 30
    %v714 = vshll.u32 %v713, 30
    %v715 = vsub.s32 %v711, %v714
    %vm716 = vcmp.lt.s32.totalorder %v715, 0
    %v717 = vsub.s32 0, %v715
    %v718 = vsel %vm716, %v717, %v715
    %v719 = vclz %v718
    %v720 = vsub.s32 %v719, 2
    %vm721 = vcmp.gt.s32.totalorder 0, %v720
    %v722 = vsel %vm721, 0, %v720
    %v723 = vsub.s32 32, %v722
    %v724 = vshll.u32 %v715, %v722
    %v725 = vshrl.u32 %v707, %v723
    %v726 = vor.u32 %v724, %v725
    %v727 = vsub.s32 4294967266, %v722
    %v728 = vadd.s32 %v727, 127
    %v729 = vshll.u32 %v728, 23
    %v730 = vor.u32 4788187, %v729
    %v731 = vand.u32 2147483647, %v730
    %v733 = vcvt.s32.f32 %v726
    %v734 = vmul.f32 %v733, %v731
    %v735 = vxor.u32 %v734, 2147483648
    %v736 = vsel %vm653, %v735, %v734
    %v737 = vsub.s32 4, %v713
    %v738 = vsel %vm653, %v737, %v713
    %v739 = vsel %vm652, %v128, %v736
    %v740 = vsel %vm652, 0, %v738
    %v741 = vcosq.f32.pop %v739
    %v742 = vsinq.f32.pop %v739
    %vm743 = vweird.f32 %v128
    %v744 = vadd.s32 %v740, 3
    %v745 = vand.u32 %v744, 3
    %vm746 = vcmp.lt.s32.totalorder %v745, 2
    %vm747 = vcmp.eq.s32.totalorder %v745, 0
    %v748 = vxor.u32 %v742, 2147483648
    %v749 = vsel %vm747, %v741, %v748
    %vm750 = vcmp.eq.s32.totalorder %v745, 2
    %v751 = vxor.u32 %v741, 2147483648
    %v752 = vsel %vm750, %v751, %v742
    %v753 = vsel %vm746, %v749, %v752
    %v754 = vsel %vm743, nan, %v753
    %v755 = vand.u32 2147483647, %v129
    %vm756 = vcmp.le.f32.partialorder %v755, 0.7853982
    %vm757 = vcmp.lt.s32.totalorder %v129, 0
    %v758 = vand.u32 %v129, 2139095040
    %v759 = vshrl.u32 %v758, 23
    %v760 = vsub.s32 %v759, 127
    %v761 = vand.u32 2147483647, %v129
    %v762 = vand.u32 %v761, 8388607
    %v763 = vor.u32 %v762, 8388608
    %v764 = vsub.s32 0, %v763
    %v765 = vadd.s32 %v760, 1
    %vm766 = vcmp.gt.s32.totalorder %v765, 0
    %v767 = vsel %vm766, %v765, 0
    %v768 = vshrl.u32 %v767, 5
    %v769 = vand.u32 %v767, 31
    %v770 = vsub.s32 32, %v769
    %v771 = vshrl.u32 683565275, %v770
    %v772 = vshll.u32 683565275, %v769
    %v773 = vshrl.u32 2475754826, %v770
    %v774 = vor.u32 %v772, %v773
    %v775 = vshll.u32 2475754826, %v769
    %v776 = vshrl.u32 2131351028, %v770
    %v777 = vor.u32 %v775, %v776
    %v778 = vshll.u32 2131351028, %v769
    %v779 = vshrl.u32 2102212464, %v770
    %v780 = vor.u32 %v778, %v779
    %v781 = vshll.u32 2102212464, %v769
    %v782 = vshrl.u32 920167782, %v770
    %v783 = vor.u32 %v781, %v782
    %v784 = vshll.u32 920167782, %v769
    %v785 = vshrl.u32 1326507024, %v770
    %v786 = vor.u32 %v784, %v785
    %vm787 = vcmp.lt.s32.totalorder %v768, 1
    %vm788 = vcmp.lt.s32.totalorder %v768, 2
    %vm789 = vcmp.lt.s32.totalorder %v768, 3
    %vm790 = vcmp.lt.s32.totalorder %v768, 4
    %v791 = vsel %vm787, %v771, %v774
    %v792 = vsel %vm790, %v780, 2102212464
    %v793 = vsel %vm789, %v777, %v792
    %v794 = vsel %vm788, %v791, %v793
    %v795 = vsel %vm787, %v774, %v777
    %v796 = vsel %vm790, %v783, 920167782
    %v797 = vsel %vm789, %v780, %v796
    %v798 = vsel %vm788, %v795, %v797
    %v799 = vsel %vm787, %v777, %v780
    %v800 = vsel %vm790, %v786, 1326507024
    %v801 = vsel %vm789, %v783, %v800
    %v802 = vsel %vm788, %v799, %v801
    %v803 = vshll.u32 %v763, 8
    %v804 = vmul.u32.u64.compose %v803, %v802
    %v805 = vextract.low.u32 %v804
    %v806 = vextract.high.u32 %v804
    %v807 = vmul.u32.u64.compose %v803, %v798
    %v808 = vextract.low.u32 %v807
    %v809 = vextract.high.u32 %v807
    %v810 = vmul.u32 %v803, %v794
    %v811 = vadd.s32 %v806, %v808
    %vm812 = vc.u32 %v806, %v808
    %v813 = vadd.s32 %v809, 1
    %v814 = vsel %vm812, %v813, %v809
    %v815 = vadd.s32 %v810, %v814
    %v816 = vadd.s32 %v815, 536870912
    %v817 = vshrl.u32 %v816, 30
    %v818 = vshll.u32 %v817, 30
    %v819 = vsub.s32 %v815, %v818
    %vm820 = vcmp.lt.s32.totalorder %v819, 0
    %v821 = vsub.s32 0, %v819
    %v822 = vsel %vm820, %v821, %v819
    %v823 = vclz %v822
    %v824 = vsub.s32 %v823, 2
    %vm825 = vcmp.gt.s32.totalorder 0, %v824
    %v826 = vsel %vm825, 0, %v824
    %v827 = vsub.s32 32, %v826
    %v828 = vshll.u32 %v819, %v826
    %v829 = vshrl.u32 %v811, %v827
    %v830 = vor.u32 %v828, %v829
    %v831 = vsub.s32 4294967266, %v826
    %v832 = vadd.s32 %v831, 127
    %v833 = vshll.u32 %v832, 23
    %v834 = vor.u32 4788187, %v833
    %v835 = vand.u32 2147483647, %v834
    %v837 = vcvt.s32.f32 %v830
    %v838 = vmul.f32 %v837, %v835
    %v839 = vxor.u32 %v838, 2147483648
    %v840 = vsel %vm757, %v839, %v838
    %v841 = vsub.s32 4, %v817
    %v842 = vsel %vm757, %v841, %v817
    %v843 = vsel %vm756, %v129, %v840
    %v844 = vsel %vm756, 0, %v842
    %v845 = vcosq.f32.pop %v843
    %v846 = vsinq.f32.pop %v843
    %vm847 = vweird.f32 %v129
    %v848 = vadd.s32 %v844, 3
    %v849 = vand.u32 %v848, 3
    %vm850 = vcmp.lt.s32.totalorder %v849, 2
    %vm851 = vcmp.eq.s32.totalorder %v849, 0
    %v852 = vxor.u32 %v846, 2147483648
    %v853 = vsel %vm851, %v845, %v852
    %vm854 = vcmp.eq.s32.totalorder %v849, 2
    %v855 = vxor.u32 %v845, 2147483648
    %v856 = vsel %vm854, %v855, %v846
    %v857 = vsel %vm850, %v853, %v856
    %v858 = vsel %vm847, nan, %v857
    %v859 = vand.u32 2147483647, %v130
    %vm860 = vcmp.le.f32.partialorder %v859, 0.7853982
    %vm861 = vcmp.lt.s32.totalorder %v130, 0
    %v862 = vand.u32 %v130, 2139095040
    %v863 = vshrl.u32 %v862, 23
    %v864 = vsub.s32 %v863, 127
    %v865 = vand.u32 2147483647, %v130
    %v866 = vand.u32 %v865, 8388607
    %v867 = vor.u32 %v866, 8388608
    %v868 = vsub.s32 0, %v867
    %v869 = vadd.s32 %v864, 1
    %vm870 = vcmp.gt.s32.totalorder %v869, 0
    %v871 = vsel %vm870, %v869, 0
    %v872 = vshrl.u32 %v871, 5
    %v873 = vand.u32 %v871, 31
    %v874 = vsub.s32 32, %v873
    %v875 = vshrl.u32 683565275, %v874
    %v876 = vshll.u32 683565275, %v873
    %v877 = vshrl.u32 2475754826, %v874
    %v878 = vor.u32 %v876, %v877
    %v879 = vshll.u32 2475754826, %v873
    %v880 = vshrl.u32 2131351028, %v874
    %v881 = vor.u32 %v879, %v880
    %v882 = vshll.u32 2131351028, %v873
    %v883 = vshrl.u32 2102212464, %v874
    %v884 = vor.u32 %v882, %v883
    %v885 = vshll.u32 2102212464, %v873
    %v886 = vshrl.u32 920167782, %v874
    %v887 = vor.u32 %v885, %v886
    %v888 = vshll.u32 920167782, %v873
    %v889 = vshrl.u32 1326507024, %v874
    %v890 = vor.u32 %v888, %v889
    %vm891 = vcmp.lt.s32.totalorder %v872, 1
    %vm892 = vcmp.lt.s32.totalorder %v872, 2
    %vm893 = vcmp.lt.s32.totalorder %v872, 3
    %vm894 = vcmp.lt.s32.totalorder %v872, 4
    %v895 = vsel %vm891, %v875, %v878
    %v896 = vsel %vm894, %v884, 2102212464
    %v897 = vsel %vm893, %v881, %v896
    %v898 = vsel %vm892, %v895, %v897
    %v899 = vsel %vm891, %v878, %v881
    %v900 = vsel %vm894, %v887, 920167782
    %v901 = vsel %vm893, %v884, %v900
    %v902 = vsel %vm892, %v899, %v901
    %v903 = vsel %vm891, %v881, %v884
    %v904 = vsel %vm894, %v890, 1326507024
    %v905 = vsel %vm893, %v887, %v904
    %v906 = vsel %vm892, %v903, %v905
    %v907 = vshll.u32 %v867, 8
    %v908 = vmul.u32.u64.compose %v907, %v906
    %v909 = vextract.low.u32 %v908
    %v910 = vextract.high.u32 %v908
    %v911 = vmul.u32.u64.compose %v907, %v902
    %v912 = vextract.low.u32 %v911
    %v913 = vextract.high.u32 %v911
    %v914 = vmul.u32 %v907, %v898
    %v915 = vadd.s32 %v910, %v912
    %vm916 = vc.u32 %v910, %v912
    %v917 = vadd.s32 %v913, 1
    %v918 = vsel %vm916, %v917, %v913
    %v919 = vadd.s32 %v914, %v918
    %v920 = vadd.s32 %v919, 536870912
    %v921 = vshrl.u32 %v920, 30
    %v922 = vshll.u32 %v921, 30
    %v923 = vsub.s32 %v919, %v922
    %vm924 = vcmp.lt.s32.totalorder %v923, 0
    %v925 = vsub.s32 0, %v923
    %v926 = vsel %vm924, %v925, %v923
    %v927 = vclz %v926
    %v928 = vsub.s32 %v927, 2
    %vm929 = vcmp.gt.s32.totalorder 0, %v928
    %v930 = vsel %vm929, 0, %v928
    %v931 = vsub.s32 32, %v930
    %v932 = vshll.u32 %v923, %v930
    %v933 = vshrl.u32 %v915, %v931
    %v934 = vor.u32 %v932, %v933
    %v935 = vsub.s32 4294967266, %v930
    %v936 = vadd.s32 %v935, 127
    %v937 = vshll.u32 %v936, 23
    %v938 = vor.u32 4788187, %v937
    %v939 = vand.u32 2147483647, %v938
    %v941 = vcvt.s32.f32 %v934
    %v942 = vmul.f32 %v941, %v939
    %v943 = vxor.u32 %v942, 2147483648
    %v944 = vsel %vm861, %v943, %v942
    %v945 = vsub.s32 4, %v921
    %v946 = vsel %vm861, %v945, %v921
    %v947 = vsel %vm860, %v130, %v944
    %v948 = vsel %vm860, 0, %v946
    %v949 = vcosq.f32.pop %v947
    %v950 = vsinq.f32.pop %v947
    %vm951 = vweird.f32 %v130
    %v952 = vadd.s32 %v948, 3
    %v953 = vand.u32 %v952, 3
    %vm954 = vcmp.lt.s32.totalorder %v953, 2
    %vm955 = vcmp.eq.s32.totalorder %v953, 0
    %v956 = vxor.u32 %v950, 2147483648
    %v957 = vsel %vm955, %v949, %v956
    %vm958 = vcmp.eq.s32.totalorder %v953, 2
    %v959 = vxor.u32 %v949, 2147483648
    %v960 = vsel %vm958, %v959, %v950
    %v961 = vsel %vm954, %v957, %v960
    %v962 = vsel %vm951, nan, %v961
    %963 = vst [vmem:[#allocation2] sm:$0xff] %v234
    %964 = vst [vmem:[#allocation2 + $0x8] sm:$0xff] %v338
    %965 = vst [vmem:[#allocation2 + $0x10] sm:$0xff] %v442
    %966 = vst [vmem:[#allocation2 + $0x18] sm:$0xff] %v546
    %967 = vst [vmem:[#allocation2 + $0x20] sm:$0xff] %v650
    %968 = vst [vmem:[#allocation2 + $0x28] sm:$0xff] %v754
    %969 = vst [vmem:[#allocation2 + $0x30] sm:$0xff] %v858
    %970 = vst [vmem:[#allocation2 + $0x38] sm:$0xff] %v962
    // Predicated region
    $region18: #{tpu_custom_call.1} parent=1 // pred_check
      _
    $region19: #{tpu_custom_call.1} parent=1 // pred_check_branch
      %972 = sbr.rel (0) target = $region21
    $region20: #{tpu_custom_call.1} parent=1 // pred_region
      %s974 = ssub.s32 1024, 1024
      %975 = vsyncadd [#allocation3], %s974
      %s976 = sshll.u32 [#allocation2], 4
      %s977 = int_to_ptr.vmem [resolvable:$true] %s976
      %982 = dma.vmem_to_hbm [thread:$0]  %s977, 1024, %s4, [#allocation3], 256, 256, 16
    $region21: #{tpu_custom_call.1} parent=1 // pred_fallthru
      _
    // Predicated region
    $region22: #{tpu_custom_call.1} parent=1 // pred_check
      _
    $region23: #{tpu_custom_call.1} parent=1 // pred_check_branch
      %984 = sbr.rel (0) target = $region25
    $region24: #{tpu_custom_call.1} parent=1 // pred_region
      %985 = dma.done [#allocation3], 1024
    $region25: #{tpu_custom_call.1} parent=1 // pred_fallthru
      _
    %986 = vsyncpa [#allocation3], 1

</llo_original>
